<compile_context>
chip_gen: v5e
topology: v5e:2x2
jax: 0.10.0
libtpu: 0.0.40
codegen_flags: <defaults>
</compile_context>

<pallas_src>
import functools

import jax
import jax.numpy as jnp
from jax import lax
from jax.experimental import pallas as pl
from jax.experimental.pallas import tpu as pltpu


def _round_up(a: int, b: int) -> int:
    return (a + b - 1) // b * b


def _default_tm() -> int:
    # 256-wide row tiles fill the 2x256x256 MXU on v6e/v7x; older chips (128x128 MXU)
    # gain nothing past 128 and have tighter VMEM / DMA budgets.
    try:
        kind = jax.devices()[0].device_kind.lower()
        if ("v6" in kind) or ("v7" in kind):
            return 256
    except Exception:
        pass
    return 128


def _quantize_kernel(x_ref, w_ref, inv_wn_ref, q_ref, idx_ref, *, q_valid: int):
    x = x_ref[...]                      # (tm, E_pad), native dtype (bf16 stays bf16)
    w = w_ref[...]                      # (Q_pad, E_pad), native dtype

    # --- cosine score (up to the positive per-row factor ||x||) --------------
    # Contract on E directly; W stays in its native (Q, E) layout (no transpose).
    dot = lax.dot_general(
        x, w,
        dimension_numbers=(((1,), (1,)), ((), ())),
        preferred_element_type=jnp.float32,
    )                                    # (tm, Q_pad) f32
    score = dot * inv_wn_ref[...]        # broadcast (1, Q_pad); == cos_sim * ||x||

    lane = lax.broadcasted_iota(jnp.int32, score.shape, 1)
    if q_valid < score.shape[-1]:        # static: mask padded codebook rows
        score = jnp.where(lane < q_valid, score, -jnp.inf)

    # --- first-occurrence argmax over the codebook ----------------------------
    # argmin(1 - cos) == argmax(cos); ||x|| > 0 is a common positive row factor.
    best = jnp.max(score, axis=-1, keepdims=True)
    idx = jnp.min(
        jnp.where(score >= best, lane, score.shape[-1]),
        axis=-1, keepdims=True,
    )                                    # (tm, 1) int32

    # --- gather codebook rows via one-hot matmul (MXU; exact since one-hot is 0/1) ---
    onehot = (lane == idx).astype(w.dtype)                           # (tm, Q_pad)
    q_data = jnp.dot(onehot, w, preferred_element_type=jnp.float32)  # (tm, E_pad)

    q_ref[...] = q_data.astype(q_ref.dtype)
    idx_ref[...] = idx


def quantizing_cossim(x, weight, *, eps: float = 1e-8, tm=None):
    """x: (..., E) float, weight: (Q, E) float -> (quantized (..., E), idx (...,))."""
    orig_shape = x.shape
    Q, E = weight.shape
    assert orig_shape[-1] == E
    h = x.reshape(-1, E)
    B = h.shape[0]

    if tm is None:
        tm = _default_tm()
    tm = max(8, min(tm, _round_up(B, 8)))    # no wider than the (padded) batch
    B_pad = _round_up(B, tm)
    E_pad = _round_up(E, 128)
    Q_pad = _round_up(Q, 128)

    # Grid-invariant codebook work, hoisted out of the kernel entirely.
    wf = weight.astype(jnp.float32)
    inv_wn = 1.0 / jnp.maximum(jnp.sqrt(jnp.sum(wf * wf, axis=-1)), eps)   # (Q,)
    inv_wn = jnp.pad(inv_wn, (0, Q_pad - Q)).reshape(1, Q_pad)

    hp = jnp.pad(h, ((0, B_pad - B), (0, E_pad - E)))
    wp = jnp.pad(weight, ((0, Q_pad - Q), (0, E_pad - E)))

    grid = (B_pad // tm,)

    # VMEM budget: double-buffered row tiles + resident codebook + f32 intermediates.
    est = (2 * tm * E_pad * hp.dtype.itemsize        # x tiles
           + 2 * Q_pad * E_pad * wp.dtype.itemsize   # codebook (alloc is 2x even if DMA'd once)
           + 2 * Q_pad * 4                           # 1/||w||
           + 2 * tm * E_pad * wp.dtype.itemsize      # q_data out tiles
           + 2 * tm * 128 * 4                        # idx out tiles (padded)
           + 4 * tm * Q_pad * 4)                     # f32 score/one-hot intermediates
    vmem_limit = int(min(max(est + (8 << 20), 32 << 20), 112 << 20))

    kernel = functools.partial(_quantize_kernel, q_valid=Q)
    q_out, idx_out = pl.pallas_call(
        kernel,
        out_shape=(
            jax.ShapeDtypeStruct((B_pad, E_pad), weight.dtype),
            jax.ShapeDtypeStruct((B_pad, 1), jnp.int32),
        ),
        grid_spec=pltpu.PrefetchScalarGridSpec(
            num_scalar_prefetch=0,
            grid=grid,
            in_specs=[
                pl.BlockSpec((tm, E_pad), lambda i: (i, 0)),      # x row tile
                pl.BlockSpec((Q_pad, E_pad), lambda i: (0, 0)),   # codebook (invariant)
                pl.BlockSpec((1, Q_pad), lambda i: (0, 0)),       # 1/||w||  (invariant)
            ],
            out_specs=[
                pl.BlockSpec((tm, E_pad), lambda i: (i, 0)),
                pl.BlockSpec((tm, 1), lambda i: (i, 0)),
            ],
        ),
        compiler_params=pltpu.CompilerParams(
            dimension_semantics=("parallel",),
            vmem_limit_bytes=vmem_limit,
        ),
    )(hp, wp, inv_wn)

    q_data = q_out[:B, :E].reshape(orig_shape[:-1] + (E,))
    q_idx = idx_out[:B, 0].reshape(orig_shape[:-1])
    return q_data, q_idx


def _reference(x, weight, eps=1e-8):
    xf = x.astype(jnp.float32)
    wf = weight.astype(jnp.float32)
    dot = xf @ wf.T
    norm = jnp.linalg.norm(xf, axis=-1)[:, None] * jnp.linalg.norm(wf, axis=-1)[None, :]
    norm = jnp.maximum(norm, eps)
    dist = 1.0 - dot / norm
    idx = jnp.argmin(dist, axis=-1)
    return weight[idx], idx


if __name__ == "__main__":
    key = jax.random.PRNGKey(0)
    kx, kw = jax.random.split(key)

    B, E, Q = 16, 32, 16          # num_quantizing=16, quantizing_dim=32
    mean, std = 0.0, 1.0

    x = jax.random.normal(kx, (B, E), dtype=jnp.float32)
    weight = mean + std * jax.random.normal(kw, (Q, E), dtype=jnp.float32)

    q_data, q_idx = quantizing_cossim(x, weight)
    q_data, q_idx = jax.block_until_ready((q_data, q_idx))

    ref_q, ref_idx = _reference(x, weight)
    assert q_data.shape == (B, E) and q_idx.shape == (B,)
    assert jnp.array_equal(q_idx, ref_idx.astype(jnp.int32))
    assert jnp.allclose(q_data, ref_q, atol=1e-5, rtol=1e-5)

    print("KERNEL_OK")
</pallas_src>

<mosaic_0001>
module attributes {stable_mosaic.version = 11 : i64} {
  func.func @_quantize_kernel(%arg0: i32, %arg1: memref<16x128xf32, #tpu.memory_space<vmem>>, %arg2: memref<128x128xf32, #tpu.memory_space<vmem>>, %arg3: memref<1x128xf32, #tpu.memory_space<vmem>>, %arg4: memref<16x128xf32, #tpu.memory_space<vmem>>, %arg5: memref<16x1xi32, #tpu.memory_space<vmem>>) attributes {dimension_semantics = [#tpu.dimension_semantics<parallel>], iteration_bounds = array<i64: 1>, scalar_prefetch = 0 : i64, scratch_operands = 0 : i64, tpu.core_type = #tpu.core_type<tc>, window_params = [{transform_indices = @transform_0, window_bounds = array<i64: 16, 128>}, {pipeline_mode = #tpu.pipeline_mode<synchronous>, transform_indices = @transform_1, window_bounds = array<i64: 128, 128>}, {pipeline_mode = #tpu.pipeline_mode<synchronous>, transform_indices = @transform_2, window_bounds = array<i64: 1, 128>}, {transform_indices = @transform_3, window_bounds = array<i64: 16, 128>}, {transform_indices = @transform_4, window_bounds = array<i64: 16, 1>}]} {
    %c0 = arith.constant 0 : index
    %c0_0 = arith.constant 0 : index
    %0 = vector.load %arg1[%c0, %c0_0] : memref<16x128xf32, #tpu.memory_space<vmem>>, vector<16x128xf32>
    %c0_1 = arith.constant 0 : index
    %c0_2 = arith.constant 0 : index
    %1 = vector.load %arg2[%c0_1, %c0_2] : memref<128x128xf32, #tpu.memory_space<vmem>>, vector<128x128xf32>
    %cst = arith.constant dense<0.000000e+00> : vector<16x128xf32>
    %2 = tpu.matmul %0, %1, %cst {dimension_numbers = #tpu.dot_dimension_numbers<[1], [1], [0], [0], [0, 0, 1, 0], [], []>} : vector<16x128xf32>, vector<128x128xf32>, vector<16x128xf32> -> vector<16x128xf32>
    %c0_3 = arith.constant 0 : index
    %c0_4 = arith.constant 0 : index
    %3 = vector.load %arg3[%c0_3, %c0_4] : memref<1x128xf32, #tpu.memory_space<vmem>>, vector<1x128xf32>
    %4 = vector.broadcast %3 : vector<1x128xf32> to vector<16x128xf32>
    %5 = arith.mulf %2, %4 : vector<16x128xf32>
    %6 = tpu.iota {dimensions = array<i32: 1>} : vector<16x128xi32>
    %c16_i32 = arith.constant 16 : i32
    %7 = vector.broadcast %c16_i32 : i32 to vector<16x128xi32>
    %8 = arith.cmpi slt, %6, %7 : vector<16x128xi32>
    %cst_5 = arith.constant 0xFF800000 : f32
    %9 = vector.broadcast %cst_5 : f32 to vector<16x128xf32>
    %10 = arith.select %8, %5, %9 : vector<16x128xi1>, vector<16x128xf32>
    %cst_6 = arith.constant dense<0xFF800000> : vector<16xf32>
    %11 = vector.multi_reduction <maximumf>, %10, %cst_6 [1] : vector<16x128xf32> to vector<16xf32>
    %12 = vector.shape_cast %11 : vector<16xf32> to vector<16x1xf32>
    %13 = vector.broadcast %12 : vector<16x1xf32> to vector<16x128xf32>
    %14 = arith.cmpf oge, %10, %13 : vector<16x128xf32>
    %c128_i32 = arith.constant 128 : i32
    %15 = vector.broadcast %c128_i32 : i32 to vector<16x128xi32>
    %16 = arith.select %14, %6, %15 : vector<16x128xi1>, vector<16x128xi32>
    %cst_7 = arith.constant dense<2147483647> : vector<16xi32>
    %17 = vector.multi_reduction <minsi>, %16, %cst_7 [1] : vector<16x128xi32> to vector<16xi32>
    %18 = vector.shape_cast %17 : vector<16xi32> to vector<16x1xi32>
    %19 = vector.broadcast %18 : vector<16x1xi32> to vector<16x128xi32>
    %20 = arith.cmpi eq, %6, %19 : vector<16x128xi32>
    %21 = arith.extui %20 : vector<16x128xi1> to vector<16x128xi32>
    %22 = arith.sitofp %21 : vector<16x128xi32> to vector<16x128xf32>
    %cst_8 = arith.constant dense<0.000000e+00> : vector<16x128xf32>
    %23 = tpu.matmul %22, %1, %cst_8 {dimension_numbers = #tpu.dot_dimension_numbers<[1], [0], [0], [1], [0, 0, 1, 1], [], []>} : vector<16x128xf32>, vector<128x128xf32>, vector<16x128xf32> -> vector<16x128xf32>
    %c0_9 = arith.constant 0 : index
    %c0_10 = arith.constant 0 : index
    %24 = vector.load %arg4[%c0_9, %c0_10] : memref<16x128xf32, #tpu.memory_space<vmem>>, vector<16x128xf32>
    tpu.vector_store %arg4[%c0_9, %c0_10], %23 {strides = array<i32>} : memref<16x128xf32, #tpu.memory_space<vmem>>, vector<16x128xf32>,
    %c0_11 = arith.constant 0 : index
    %c0_12 = arith.constant 0 : index
    %25 = vector.load %arg5[%c0_11, %c0_12] : memref<16x1xi32, #tpu.memory_space<vmem>>, vector<16x1xi32>
    tpu.vector_store %arg5[%c0_11, %c0_12], %18 {strides = array<i32>} : memref<16x1xi32, #tpu.memory_space<vmem>>, vector<16x1xi32>,
    return
  }
  func.func @transform_0(%arg0: i32) -> (i32, i32) {
    %c0_i32 = arith.constant 0 : i32
    %c0_i32_0 = arith.constant 0 : i32
    return %arg0, %c0_i32 : i32, i32
  }
  func.func @transform_1(%arg0: i32) -> (i32, i32) {
    %c0_i32 = arith.constant 0 : i32
    %c0_i32_0 = arith.constant 0 : i32
    %c0_i32_1 = arith.constant 0 : i32
    return %c0_i32, %c0_i32_0 : i32, i32
  }
  func.func @transform_2(%arg0: i32) -> (i32, i32) {
    %c0_i32 = arith.constant 0 : i32
    %c0_i32_0 = arith.constant 0 : i32
    %c0_i32_1 = arith.constant 0 : i32
    return %c0_i32, %c0_i32_0 : i32, i32
  }
  func.func @transform_3(%arg0: i32) -> (i32, i32) {
    %c0_i32 = arith.constant 0 : i32
    %c0_i32_0 = arith.constant 0 : i32
    return %arg0, %c0_i32 : i32, i32
  }
  func.func @transform_4(%arg0: i32) -> (i32, i32) {
    %c0_i32 = arith.constant 0 : i32
    %c0_i32_0 = arith.constant 0 : i32
    return %arg0, %c0_i32 : i32, i32
  }
}

</mosaic_0001>

<llo_original>
// kernel: tpu_custom_call.1
$region0: #{tpu_custom_call.1}
  #allocation0 [shape = 'u32[]', space=smem, size = 0x4, offset = 0x4, fixed_abs, tag = 'smem constant byte address 0x4 - core index']
  #allocation1 [shape = 'u32[72,128]{1,0:T(1,128)}', space=vmem, size = 0x9000, scoped, tag = 'internal scratch']
  %s0 = inlined_call_operand.hbm [shape: f32[16,128], index: 0, kind: input, shape index: {}]
  %s1 = inlined_call_operand.hbm [shape: f32[128,128], index: 1, kind: input, shape index: {}]
  %s2 = inlined_call_operand.vmem [shape: f32[1,128], index: 2, kind: input, shape index: {}]
  %s3 = inlined_call_operand.hbm [shape: f32[16,128], index: 3, kind: output, shape index: {0}]
  %s4 = inlined_call_operand.vmem [shape: s32[16,1], index: 4, kind: output, shape index: {1}]
  %5 = xla_tuple %s3, %s4
  %s6 = sld [smem:[#allocation0]]
  $region38: #{tpu_custom_call.1} parent=0
    _
  %s8 = ssub.s32 1, %s6
  %s9 = scalar_select 0, %s8, %s6
  $region1: #{tpu_custom_call.1} parent=0
    #allocation2 [shape = 'u8[8192]{0}', space=vmem, size = 0x2000, scoped, tag = 'input window, operand 0, single buffered']
    #allocation3 [shape = 's32[1]{0}', space=sflag, size = 0x4, scoped, tag = 'scoped memory for tpu_custom_call.1']
    #allocation4 [shape = 's32[1]{0}', space=sflag, size = 0x4, scoped, tag = 'scoped memory for tpu_custom_call.1']
    #allocation5 [shape = 'u8[65536]{0}', space=vmem, size = 0x10000, scoped, tag = 'input window, operand 1, single buffered']
    #allocation6 [shape = 's32[1]{0}', space=sflag, size = 0x4, scoped, tag = 'scoped memory for tpu_custom_call.1']
    #allocation7 [shape = 'u8[8192]{0}', space=vmem, size = 0x2000, scoped, tag = 'output window, operand 0, single buffered']
    %10 = vsyncpa [#allocation3], 0
    %11 = vsyncpa [#allocation6], 0
    %12 = vsyncpa [#allocation4], 0
    // Predicated region
    $region2: #{tpu_custom_call.1} parent=1 // pred_check
      _
    $region3: #{tpu_custom_call.1} parent=1 // pred_check_branch
      %14 = sbr.rel (0) target = $region5
    $region4: #{tpu_custom_call.1} parent=1 // pred_region
      %16 = vsyncadd [#allocation3], 0
      %s17 = sshll.u32 %s0, 4
      %s18 = int_to_ptr.hbm [resolvable:$true] %s17
      %s19 = sshll.u32 [#allocation2], 4
      %s20 = int_to_ptr.vmem [resolvable:$true] %s19
      %25 = dma.hbm_to_vmem [thread:$0]  %s18, 256, %s20, [#allocation3], 128, 128, 8
    $region5: #{tpu_custom_call.1} parent=1 // pred_fallthru
      _
    // Predicated region
    $region6: #{tpu_custom_call.1} parent=1 // pred_check
      _
    $region7: #{tpu_custom_call.1} parent=1 // pred_check_branch
      %27 = sbr.rel (0) target = $region9
    $region8: #{tpu_custom_call.1} parent=1 // pred_region
      %29 = vsyncadd [#allocation6], 0
      %s30 = sshll.u32 %s1, 4
      %s31 = int_to_ptr.hbm [resolvable:$true] %s30
      %s32 = sshll.u32 [#allocation5], 4
      %s33 = int_to_ptr.vmem [resolvable:$true] %s32
      %38 = dma.hbm_to_vmem [thread:$0]  %s31, 2048, %s33, [#allocation6], 128, 128, 8
    $region9: #{tpu_custom_call.1} parent=1 // pred_fallthru
      _
    // Predicated region
    $region10: #{tpu_custom_call.1} parent=1 // pred_check
      _
    $region11: #{tpu_custom_call.1} parent=1 // pred_check_branch
      %40 = sbr.rel (0) target = $region13
    $region12: #{tpu_custom_call.1} parent=1 // pred_region
      _
    $region13: #{tpu_custom_call.1} parent=1 // pred_fallthru
      _
    // Predicated region
    $region14: #{tpu_custom_call.1} parent=1 // pred_check
      _
    $region15: #{tpu_custom_call.1} parent=1 // pred_check_branch
      %42 = sbr.rel (0) target = $region17
    $region16: #{tpu_custom_call.1} parent=1 // pred_region
      %44 = dma.done [#allocation3], 256
    $region17: #{tpu_custom_call.1} parent=1 // pred_fallthru
      _
    // Predicated region
    $region18: #{tpu_custom_call.1} parent=1 // pred_check
      _
    $region19: #{tpu_custom_call.1} parent=1 // pred_check_branch
      %46 = sbr.rel (0) target = $region21
    $region20: #{tpu_custom_call.1} parent=1 // pred_region
      %48 = dma.done [#allocation6], 2048
    $region21: #{tpu_custom_call.1} parent=1 // pred_fallthru
      _
    %v49 = vld [vmem:[#allocation2] sm:$0xff]
    %v50 = vld [vmem:[#allocation2 + $0x8] sm:$0xff]
    %v51 = vld [vmem:[#allocation5] sm:$0xff]
    %v52 = vld [vmem:[#allocation5 + $0x8] sm:$0xff]
    %v53 = vld [vmem:[#allocation5 + $0x10] sm:$0xff]
    %v54 = vld [vmem:[#allocation5 + $0x18] sm:$0xff]
    %v55 = vld [vmem:[#allocation5 + $0x20] sm:$0xff]
    %v56 = vld [vmem:[#allocation5 + $0x28] sm:$0xff]
    %v57 = vld [vmem:[#allocation5 + $0x30] sm:$0xff]
    %v58 = vld [vmem:[#allocation5 + $0x38] sm:$0xff]
    %v59 = vld [vmem:[#allocation5 + $0x40] sm:$0xff]
    %v60 = vld [vmem:[#allocation5 + $0x48] sm:$0xff]
    %v61 = vld [vmem:[#allocation5 + $0x50] sm:$0xff]
    %v62 = vld [vmem:[#allocation5 + $0x58] sm:$0xff]
    %v63 = vld [vmem:[#allocation5 + $0x60] sm:$0xff]
    %v64 = vld [vmem:[#allocation5 + $0x68] sm:$0xff]
    %v65 = vld [vmem:[#allocation5 + $0x70] sm:$0xff]
    %v66 = vld [vmem:[#allocation5 + $0x78] sm:$0xff]
    %67 = vmatpush.xpose.msra.mxu0 %v66
    %68 = vmatpush.xpose.msra.mxu0 %v65
    %69 = vmatpush.xpose.msra.mxu0 %v64
    %70 = vmatpush.xpose.msra.mxu0 %v63
    %71 = vmatpush.xpose.msra.mxu0 %v62
    %72 = vmatpush.xpose.msra.mxu0 %v61
    %73 = vmatpush.xpose.msra.mxu0 %v60
    %74 = vmatpush.xpose.msra.mxu0 %v59
    %75 = vmatpush.xpose.msra.mxu0 %v58
    %76 = vmatpush.xpose.msra.mxu0 %v57
    %77 = vmatpush.xpose.msra.mxu0 %v56
    %78 = vmatpush.xpose.msra.mxu0 %v55
    %79 = vmatpush.xpose.msra.mxu0 %v54
    %80 = vmatpush.xpose.msra.mxu0 %v53
    %81 = vmatpush.xpose.msra.mxu0 %v52
    %82 = vmatpush.xpose.msra.mxu0 %v51
    %83 = vmatmul.f32.gmra.mxu0 %v49
    %v84 = vpop.f32.mrf.mxu0
    %v85 = vadd.f32 0.0, %v84
    %86 = vmatmul.f32.gmra.mxu0 %v50
    %v87 = vpop.f32.mrf.mxu0
    %v88 = vadd.f32 0.0, %v87
    %89 = vdwg.mxu0
    %v90 = vld [vmem:[%s2] sm:$0x1]
    %v92 = vperm.slane %v90, 0
    %v94 = vmul.f32 %v85, %v92
    %v95 = vmul.f32 %v88, %v92
    %v96 = vlaneseq
    %v97 = vand.u32 %v96, 127
    %vm98 = vcmp.lt.s32.totalorder %v97, 16
    %v99 = vsel %vm98, %v94, -inf
    %v100 = vsel %vm98, %v95, -inf
    %101 = vmax.xlane.f32.xlu0 %v99
    %v102 = vpop.xlane.xlu0 %101
    %103 = vmax.xlane.f32.xlu0 %v100
    %v104 = vpop.xlane.xlu0 %103
    %vm105 = vcmp.ge.f32.partialorder %v99, %v102
    %vm106 = vcmp.ge.f32.partialorder %v100, %v104
    %v107 = vsel %vm105, %v97, 128
    %v108 = vsel %vm106, %v97, 128
    %v109 = vand.u32 %v107, 65535
    %v110 = vshra.s32 %v107, 16
    %v111 = vcvt.s32.f32 %v109
    %v112 = vcvt.s32.f32 %v110
    %113 = vmin.xlane.f32.xlu0 %v112
    %v114 = vpop.xlane.xlu0 %113
    %vm115 = vcmp.eq.f32.partialorder %v112, %v114
    %v116 = vsel %vm115, %v111, inf
    %117 = vmin.xlane.f32.xlu0 %v116
    %v118 = vpop.xlane.xlu0 %117
    %v119 = vcvt.f32.s32 %v118
    %v120 = vcvt.f32.s32 %v114
    %v121 = vshll.u32 %v120, 16
    %v122 = vadd.s32 %v121, %v119
    %v123 = vand.u32 %v108, 65535
    %v124 = vshra.s32 %v108, 16
    %v125 = vcvt.s32.f32 %v123
    %v126 = vcvt.s32.f32 %v124
    %127 = vmin.xlane.f32.xlu0 %v126
    %v128 = vpop.xlane.xlu0 %127
    %vm129 = vcmp.eq.f32.partialorder %v126, %v128
    %v130 = vsel %vm129, %v125, inf
    %131 = vmin.xlane.f32.xlu0 %v130
    %v132 = vpop.xlane.xlu0 %131
    %v133 = vcvt.f32.s32 %v132
    %v134 = vcvt.f32.s32 %v128
    %v135 = vshll.u32 %v134, 16
    %v136 = vadd.s32 %v135, %v133
    %vm137 = vcmp.eq.s32.totalorder %v97, %v122
    %vm138 = vcmp.eq.s32.totalorder %v97, %v136
    %v139 = vsel %vm137, 1, 0
    %v140 = vsel %vm138, 1, 0
    %v141 = vcvt.s32.f32 %v139
    %v142 = vcvt.s32.f32 %v140
    %143 = vmatpush.msra.mxu0 %v66
    %144 = vmatpush.msra.mxu0 %v65
    %145 = vmatpush.msra.mxu0 %v64
    %146 = vmatpush.msra.mxu0 %v63
    %147 = vmatpush.msra.mxu0 %v62
    %148 = vmatpush.msra.mxu0 %v61
    %149 = vmatpush.msra.mxu0 %v60
    %150 = vmatpush.msra.mxu0 %v59
    %151 = vmatpush.msra.mxu0 %v58
    %152 = vmatpush.msra.mxu0 %v57
    %153 = vmatpush.msra.mxu0 %v56
    %154 = vmatpush.msra.mxu0 %v55
    %155 = vmatpush.msra.mxu0 %v54
    %156 = vmatpush.msra.mxu0 %v53
    %157 = vmatpush.msra.mxu0 %v52
    %158 = vmatpush.msra.mxu0 %v51
    %159 = vmatmul.f32.gmra.mxu0 %v141
    %v160 = vpop.f32.mrf.mxu0
    %v161 = vadd.f32 0.0, %v160
    %162 = vmatmul.f32.gmra.mxu0 %v142
    %v163 = vpop.f32.mrf.mxu0
    %v164 = vadd.f32 0.0, %v163
    %165 = vdwg.mxu0
    %166 = vst [vmem:[#allocation7] sm:$0xff] %v161
    %167 = vst [vmem:[#allocation7 + $0x8] sm:$0xff] %v164
    %vm168 = vcmask 7168
    %169 = vst.msk [vmem:[%s4] sm:$0xff] %vm168, %v122
    %170 = vst.msk [vmem:[%s4 + $0x8] sm:$0xff] %vm168, %v136
    // Predicated region
    $region22: #{tpu_custom_call.1} parent=1 // pred_check
      _
    $region23: #{tpu_custom_call.1} parent=1 // pred_check_branch
      %172 = sbr.rel (0) target = $region25
    $region24: #{tpu_custom_call.1} parent=1 // pred_region
      %174 = vsyncadd [#allocation4], 0
      %s175 = sshll.u32 [#allocation7], 4
      %s176 = int_to_ptr.vmem [resolvable:$true] %s175
      %s177 = sshll.u32 %s3, 4
      %s178 = int_to_ptr.hbm [resolvable:$true] %s177
      %183 = dma.vmem_to_hbm [thread:$0]  %s176, 256, %s178, [#allocation4], 128, 128, 8
    $region25: #{tpu_custom_call.1} parent=1 // pred_fallthru
      _
    // Predicated region
    $region26: #{tpu_custom_call.1} parent=1 // pred_check
      _
    $region27: #{tpu_custom_call.1} parent=1 // pred_check_branch
      %185 = sbr.rel (0) target = $region29
    $region28: #{tpu_custom_call.1} parent=1 // pred_region
      _
    $region29: #{tpu_custom_call.1} parent=1 // pred_fallthru
      _
    // Predicated region
    $region30: #{tpu_custom_call.1} parent=1 // pred_check
      _
    $region31: #{tpu_custom_call.1} parent=1 // pred_check_branch
      %187 = sbr.rel (0) target = $region33
    $region32: #{tpu_custom_call.1} parent=1 // pred_region
      %189 = dma.done [#allocation4], 256
    $region33: #{tpu_custom_call.1} parent=1 // pred_fallthru
      _
    // Predicated region
    $region34: #{tpu_custom_call.1} parent=1 // pred_check
      _
    $region35: #{tpu_custom_call.1} parent=1 // pred_check_branch
      %191 = sbr.rel (0) target = $region37
    $region36: #{tpu_custom_call.1} parent=1 // pred_region
      _
    $region37: #{tpu_custom_call.1} parent=1 // pred_fallthru
      _
    %192 = vsyncpa [#allocation3], 1
    %193 = vsyncpa [#allocation6], 1
    %194 = vsyncpa [#allocation4], 1

</llo_original>
